<compile_context>
chip_gen: v6e
topology: v6e:2x2x1
jax: 0.10.0
libtpu: 0.0.40
codegen_flags: <defaults>
</compile_context>

<pallas_src>
import math

import jax
import jax.numpy as jnp
from jax.experimental import pallas as pl
from jax.experimental.pallas import tpu as pltpu


_INV_SQRT2 = 0.7071067811865476


def _gelu_exact(x):
    # PyTorch F.gelu default is the exact erf-based GELU (kept in f32 on the
    # VPU for bit-faithful semantics; see review note on tanh/bf16 variants).
    return 0.5 * x * (1.0 + jax.lax.erf(x * _INV_SQRT2))


def _round_up(a, b):
    return ((a + b - 1) // b) * b


def _vmem_budget_bytes():
    cap = 64 * 2**20  # conservative default (v7x per-TC VMEM)
    try:
        info = pltpu.get_tpu_info()
        cap = int(getattr(info, "vmem_capacity_bytes", cap))
    except Exception:
        pass
    return int(0.70 * cap)


# ---------------------------------------------------------------------------
# kernels
# ---------------------------------------------------------------------------
def _ff_kernel_resident(x_ref, wv_ref, wg_ref, bv_ref, bg_ref, w2_ref, b2_ref,
                        o_ref):
    # Full weight set resident in VMEM; one row tile per grid step.
    x = x_ref[...]
    hv = jnp.dot(x, wv_ref[...], preferred_element_type=jnp.float32) + bv_ref[...]
    hg = jnp.dot(x, wg_ref[...], preferred_element_type=jnp.float32) + bg_ref[...]
    g = hv * _gelu_exact(hg)                                   # GEGLU (f32)
    out = jnp.dot(g.astype(w2_ref.dtype), w2_ref[...],
                  preferred_element_type=jnp.float32) + b2_ref[...]
    # Dropout(p=0.0) is the identity.
    o_ref[...] = out.astype(o_ref.dtype)


def _ff_kernel_tiled(x_ref, wv_ref, wg_ref, bv_ref, bg_ref, w2_ref, b2_ref,
                     o_ref, acc_ref):
    # Hidden axis tiled as a reduction grid axis with an f32 VMEM accumulator.
    k = pl.program_id(1)

    @pl.when(k == 0)
    def _():
        acc_ref[...] = jnp.zeros_like(acc_ref)

    x = x_ref[...]
    hv = jnp.dot(x, wv_ref[...], preferred_element_type=jnp.float32) + bv_ref[...]
    hg = jnp.dot(x, wg_ref[...], preferred_element_type=jnp.float32) + bg_ref[...]
    g = hv * _gelu_exact(hg)                                   # GEGLU (f32)
    acc_ref[...] += jnp.dot(g.astype(w2_ref.dtype), w2_ref[...],
                            preferred_element_type=jnp.float32)

    @pl.when(k == pl.num_programs(1) - 1)
    def _():
        o_ref[...] = (acc_ref[...] + b2_ref[...]).astype(o_ref.dtype)


# ---------------------------------------------------------------------------
# parameter preparation (one-time; hoists transposes / casts out of the call)
# ---------------------------------------------------------------------------
def prepare_ff_params(w1, b1, w2, b2, *, compute_dtype=jnp.bfloat16):
    """w1: (2*hidden, D), b1: (2*hidden,), w2: (D, hidden), b2: (D,)
    (PyTorch nn.Linear layout).  Returns pre-transposed / pre-cast operands.
    The hidden axis is zero-padded to a multiple of 128 (inert padding)."""
    two_hidden, D = w1.shape
    hidden = two_hidden // 2
    assert w2.shape == (D, hidden)
    hidden_p = max(128, _round_up(hidden, 128))

    # torch chunk(2, dim=-1) on x @ W1^T: first `hidden` = value, last = gate.
    wv = jnp.transpose(w1[:hidden, :])        # (D, hidden)
    wg = jnp.transpose(w1[hidden:, :])        # (D, hidden)
    w2t = jnp.transpose(w2)                   # (hidden, D)
    bv = b1[:hidden]
    bg = b1[hidden:]
    if hidden_p != hidden:
        pad = hidden_p - hidden
        wv = jnp.pad(wv, ((0, 0), (0, pad)))
        wg = jnp.pad(wg, ((0, 0), (0, pad)))
        w2t = jnp.pad(w2t, ((0, pad), (0, 0)))
        bv = jnp.pad(bv, ((0, pad),))
        bg = jnp.pad(bg, ((0, pad),))

    cd = compute_dtype
    return {
        "wv": wv.astype(cd),
        "wg": wg.astype(cd),
        "w2t": w2t.astype(cd),
        "bv": bv.reshape(1, hidden_p).astype(jnp.float32),
        "bg": bg.reshape(1, hidden_p).astype(jnp.float32),
        "b2": b2.reshape(1, D).astype(jnp.float32),
    }


# ---------------------------------------------------------------------------
# tile selection
# ---------------------------------------------------------------------------
def _choose_plan(M, D, hidden_p, cb, ob, budget, block_m, block_h):
    tm_up = _round_up(max(M, 1), 8)

    if block_m is not None:
        tm_cands = [block_m]
    else:
        cands = [1024, 768, 512, 384, 256, 128]
        if M >= 512:
            # keep >= 2 row blocks so the parallel M axis can split across
            # both TensorCores on dual-TC chips (v7x).
            cap = max(128, _round_up(-(-M // 2), 128))
            cands = [c for c in cands if c <= cap] or [cap]
        cands = [min(c, tm_up) for c in cands]
        seen = set()
        tm_cands = [c for c in cands if c > 0 and not (c in seen or seen.add(c))]
        if not tm_cands:
            tm_cands = [tm_up]

    def resident_bytes(tm):
        return (2 * tm * D * cb                      # x tile (double-buffered)
                + 2 * tm * D * ob                    # output tile
                + 2 * (2 * D * hidden_p + hidden_p * D) * cb   # W1v/W1g/W2
                + 2 * (2 * 8 * hidden_p + 8 * D) * 4           # biases (padded)
                + 3 * tm * hidden_p * 4)             # hv / hg / g f32 temps

    def tiled_bytes(tm, th):
        return (2 * tm * D * cb                      # x tile
                + 2 * 2 * D * th * cb                # W1 value + gate tiles
                + 2 * th * D * cb                    # W2 tile
                + 2 * (2 * 8 * th + 8 * D) * 4       # bias tiles (padded)
                + 2 * tm * D * ob                    # output tile
                + tm * D * 4                         # f32 accumulator
                + 3 * tm * th * 4)                   # hv / hg / g f32 temps

    # Prefer the weights-resident path when nothing forces hidden tiling.
    if block_h is None:
        for tm in tm_cands:
            eb = resident_bytes(tm)
            if eb <= budget:
                return "resident", tm, None, eb

    # Hidden-reduction tiled path.
    if block_h is not None:
        assert hidden_p % block_h == 0, "block_h must divide (padded) hidden"
        th_cands = [block_h]
    else:
        th_cands = [d for d in (1024, 512, 256, 128) if hidden_p % d == 0]
        if not th_cands:
            th_cands = [hidden_p]
    for tm in tm_cands:
        for th in th_cands:
            eb = tiled_bytes(tm, th)
            if eb <= budget:
                return "tiled", tm, th, eb
    tm, th = tm_cands[-1], th_cands[-1]
    return "tiled", tm, th, tiled_bytes(tm, th)


# ---------------------------------------------------------------------------
# forward
# ---------------------------------------------------------------------------
def feed_forward_pallas(x, params, *, block_m=None, block_h=None):
    """x: (B, S, D).  params: output of prepare_ff_params.  Output keeps x's
    dtype; matmul accumulation is f32 regardless of the compute dtype."""
    orig_dtype = x.dtype
    B, S, D = x.shape
    wv, wg, w2t = params["wv"], params["wg"], params["w2t"]
    bv, bg, b2r = params["bv"], params["bg"], params["b2"]
    assert wv.shape[0] == D and w2t.shape[1] == D
    hidden_p = wv.shape[1]
    compute_dtype = wv.dtype

    M = B * S
    x2d = x.reshape(M, D).astype(compute_dtype)

    cb = jnp.dtype(compute_dtype).itemsize
    ob = jnp.dtype(orig_dtype).itemsize
    budget = _vmem_budget_bytes()

    mode, tm, th, est = _choose_plan(M, D, hidden_p, cb, ob, budget,
                                     block_m, block_h)
    vmem_limit = int(min(budget, max(2 * est, 16 * 2**20)))
    vmem_limit = max(vmem_limit, est)

    if mode == "resident":
        grid = (pl.cdiv(M, tm),)
        out2d = pl.pallas_call(
            _ff_kernel_resident,
            out_shape=jax.ShapeDtypeStruct((M, D), orig_dtype),
            grid_spec=pltpu.PrefetchScalarGridSpec(
                num_scalar_prefetch=0,
                grid=grid,
                in_specs=[
                    pl.BlockSpec((tm, D), lambda i: (i, 0)),          # x rows
                    pl.BlockSpec((D, hidden_p), lambda i: (0, 0)),    # W1^T val
                    pl.BlockSpec((D, hidden_p), lambda i: (0, 0)),    # W1^T gate
                    pl.BlockSpec((1, hidden_p), lambda i: (0, 0)),    # b1 val
                    pl.BlockSpec((1, hidden_p), lambda i: (0, 0)),    # b1 gate
                    pl.BlockSpec((hidden_p, D), lambda i: (0, 0)),    # W2^T
                    pl.BlockSpec((1, D), lambda i: (0, 0)),           # b2
                ],
                out_specs=pl.BlockSpec((tm, D), lambda i: (i, 0)),
            ),
            compiler_params=pltpu.CompilerParams(
                dimension_semantics=("parallel",),
                vmem_limit_bytes=vmem_limit),
        )(x2d, wv, wg, bv, bg, w2t, b2r)
    else:
        grid = (pl.cdiv(M, tm), hidden_p // th)
        out2d = pl.pallas_call(
            _ff_kernel_tiled,
            out_shape=jax.ShapeDtypeStruct((M, D), orig_dtype),
            grid_spec=pltpu.PrefetchScalarGridSpec(
                num_scalar_prefetch=0,
                grid=grid,
                in_specs=[
                    pl.BlockSpec((tm, D), lambda i, k: (i, 0)),   # x rows
                    pl.BlockSpec((D, th), lambda i, k: (0, k)),   # W1^T value
                    pl.BlockSpec((D, th), lambda i, k: (0, k)),   # W1^T gate
                    pl.BlockSpec((1, th), lambda i, k: (0, k)),   # b1 value
                    pl.BlockSpec((1, th), lambda i, k: (0, k)),   # b1 gate
                    pl.BlockSpec((th, D), lambda i, k: (k, 0)),   # W2^T
                    pl.BlockSpec((1, D), lambda i, k: (0, 0)),    # b2
                ],
                out_specs=pl.BlockSpec((tm, D), lambda i, k: (i, 0)),
                scratch_shapes=[pltpu.VMEM((tm, D), jnp.float32)],
            ),
            compiler_params=pltpu.CompilerParams(
                dimension_semantics=("parallel", "arbitrary"),
                vmem_limit_bytes=vmem_limit),
        )(x2d, wv, wg, bv, bg, w2t, b2r)

    return out2d.reshape(B, S, D)


# ---------------------------------------------------------------------------
# reference + test
# ---------------------------------------------------------------------------
def _ref_feed_forward(x, w1, b1, w2, b2):
    # Pure-JAX reference matching PyTorch semantics exactly (f32).
    h = jnp.einsum("bsd,od->bso", x, w1) + b1
    hidden = w1.shape[0] // 2
    val, gates = h[..., :hidden], h[..., hidden:]
    g = val * (0.5 * gates * (1.0 + jax.lax.erf(gates * _INV_SQRT2)))
    return jnp.einsum("bsh,oh->bso", g, w2) + b2


def _make_params(key, dim, mult):
    hidden = dim * mult
    kw1, kb1, kw2, kb2 = jax.random.split(key, 4)
    # PyTorch nn.Linear default init: U(-1/sqrt(fan_in), 1/sqrt(fan_in))
    bound1 = 1.0 / math.sqrt(dim)
    w1 = jax.random.uniform(kw1, (hidden * 2, dim), jnp.float32, -bound1, bound1)
    b1 = jax.random.uniform(kb1, (hidden * 2,), jnp.float32, -bound1, bound1)
    bound2 = 1.0 / math.sqrt(hidden)
    w2 = jax.random.uniform(kw2, (dim, hidden), jnp.float32, -bound2, bound2)
    b2 = jax.random.uniform(kb2, (dim,), jnp.float32, -bound2, bound2)
    return w1, b1, w2, b2


if __name__ == "__main__":
    key = jax.random.PRNGKey(0)
    kx1, kx2, kp1, kp2 = jax.random.split(key, 4)

    # --- Test 1: small shape, exact f32 path (weights-resident) ------------
    B, S, dim, mult = 2, 8, 32, 4            # hidden = 128
    x = jax.random.normal(kx1, (B, S, dim), jnp.float32)
    w1, b1, w2, b2 = _make_params(kp1, dim, mult)
    params_f32 = prepare_ff_params(w1, b1, w2, b2, compute_dtype=jnp.float32)

    y = jax.block_until_ready(feed_forward_pallas(x, params_f32))
    y_ref = _ref_feed_forward(x, w1, b1, w2, b2)
    assert y.shape == (B, S, dim)
    assert jnp.allclose(y, y_ref, atol=2e-5, rtol=2e-5), "f32 mismatch vs reference"

    # --- Test 2: forced hidden-reduction tiled path, ragged row tiles ------
    B2, S2, dim2, mult2 = 3, 8, 32, 8        # M = 24 (ragged w/ tm=16), hidden = 256
    x2 = jax.random.normal(kx2, (B2, S2, dim2), jnp.float32)
    w1b, b1b, w2b, b2b = _make_params(kp2, dim2, mult2)
    params2 = prepare_ff_params(w1b, b1b, w2b, b2b, compute_dtype=jnp.float32)
    y2 = jax.block_until_ready(
        feed_forward_pallas(x2, params2, block_m=16, block_h=128))
    y2_ref = _ref_feed_forward(x2, w1b, b1b, w2b, b2b)
    assert jnp.allclose(y2, y2_ref, atol=2e-5, rtol=2e-5), "accum path mismatch"

    # --- Test 3: default bf16 MXU operands (f32 accum), looser tolerance ---
    params_bf16 = prepare_ff_params(w1, b1, w2, b2)   # compute_dtype defaults bf16
    y3 = jax.block_until_ready(feed_forward_pallas(x, params_bf16))
    assert y3.dtype == x.dtype
    assert jnp.allclose(y3.astype(jnp.float32), y_ref, atol=5e-2, rtol=5e-2), \
        "bf16 path mismatch vs f32 reference"

    print("KERNEL_OK")
</pallas_src>

<mosaic_0001>
module attributes {stable_mosaic.version = 11 : i64} {
  func.func @_ff_kernel_resident(%arg0: i32, %arg1: memref<16x32xf32, #tpu.memory_space<vmem>>, %arg2: memref<32x128xf32, #tpu.memory_space<vmem>>, %arg3: memref<32x128xf32, #tpu.memory_space<vmem>>, %arg4: memref<1x128xf32, #tpu.memory_space<vmem>>, %arg5: memref<1x128xf32, #tpu.memory_space<vmem>>, %arg6: memref<128x32xf32, #tpu.memory_space<vmem>>, %arg7: memref<1x32xf32, #tpu.memory_space<vmem>>, %arg8: memref<16x32xf32, #tpu.memory_space<vmem>>) attributes {dimension_semantics = [#tpu.dimension_semantics<parallel>], iteration_bounds = array<i64: 1>, scalar_prefetch = 0 : i64, scratch_operands = 0 : i64, tpu.core_type = #tpu.core_type<tc>, window_params = [{transform_indices = @transform_0, window_bounds = array<i64: 16, 32>}, {pipeline_mode = #tpu.pipeline_mode<synchronous>, transform_indices = @transform_1, window_bounds = array<i64: 32, 128>}, {pipeline_mode = #tpu.pipeline_mode<synchronous>, transform_indices = @transform_2, window_bounds = array<i64: 32, 128>}, {pipeline_mode = #tpu.pipeline_mode<synchronous>, transform_indices = @transform_3, window_bounds = array<i64: 1, 128>}, {pipeline_mode = #tpu.pipeline_mode<synchronous>, transform_indices = @transform_4, window_bounds = array<i64: 1, 128>}, {pipeline_mode = #tpu.pipeline_mode<synchronous>, transform_indices = @transform_5, window_bounds = array<i64: 128, 32>}, {pipeline_mode = #tpu.pipeline_mode<synchronous>, transform_indices = @transform_6, window_bounds = array<i64: 1, 32>}, {transform_indices = @transform_7, window_bounds = array<i64: 16, 32>}]} {
    %c0 = arith.constant 0 : index
    %c0_0 = arith.constant 0 : index
    %0 = vector.load %arg1[%c0, %c0_0] : memref<16x32xf32, #tpu.memory_space<vmem>>, vector<16x32xf32>
    %c0_1 = arith.constant 0 : index
    %c0_2 = arith.constant 0 : index
    %1 = vector.load %arg2[%c0_1, %c0_2] : memref<32x128xf32, #tpu.memory_space<vmem>>, vector<32x128xf32>
    %cst = arith.constant dense<0.000000e+00> : vector<16x128xf32>
    %2 = tpu.matmul %0, %1, %cst {dimension_numbers = #tpu.dot_dimension_numbers<[1], [0], [0], [1], [0, 0, 1, 1], [], []>} : vector<16x32xf32>, vector<32x128xf32>, vector<16x128xf32> -> vector<16x128xf32>
    %c0_3 = arith.constant 0 : index
    %c0_4 = arith.constant 0 : index
    %3 = vector.load %arg4[%c0_3, %c0_4] : memref<1x128xf32, #tpu.memory_space<vmem>>, vector<1x128xf32>
    %4 = vector.broadcast %3 : vector<1x128xf32> to vector<16x128xf32>
    %5 = arith.addf %2, %4 : vector<16x128xf32>
    %c0_5 = arith.constant 0 : index
    %c0_6 = arith.constant 0 : index
    %6 = vector.load %arg3[%c0_5, %c0_6] : memref<32x128xf32, #tpu.memory_space<vmem>>, vector<32x128xf32>
    %cst_7 = arith.constant dense<0.000000e+00> : vector<16x128xf32>
    %7 = tpu.matmul %0, %6, %cst_7 {dimension_numbers = #tpu.dot_dimension_numbers<[1], [0], [0], [1], [0, 0, 1, 1], [], []>} : vector<16x32xf32>, vector<32x128xf32>, vector<16x128xf32> -> vector<16x128xf32>
    %c0_8 = arith.constant 0 : index
    %c0_9 = arith.constant 0 : index
    %8 = vector.load %arg5[%c0_8, %c0_9] : memref<1x128xf32, #tpu.memory_space<vmem>>, vector<1x128xf32>
    %9 = vector.broadcast %8 : vector<1x128xf32> to vector<16x128xf32>
    %10 = arith.addf %7, %9 : vector<16x128xf32>
    %cst_10 = arith.constant 5.000000e-01 : f32
    %11 = vector.broadcast %cst_10 : f32 to vector<16x128xf32>
    %12 = arith.mulf %11, %10 : vector<16x128xf32>
    %cst_11 = arith.constant 0.707106769 : f32
    %13 = vector.broadcast %cst_11 : f32 to vector<16x128xf32>
    %14 = arith.mulf %10, %13 : vector<16x128xf32>
    %15 = math.erf %14 : vector<16x128xf32>
    %cst_12 = arith.constant 1.000000e+00 : f32
    %16 = vector.broadcast %cst_12 : f32 to vector<16x128xf32>
    %17 = arith.addf %16, %15 : vector<16x128xf32>
    %18 = arith.mulf %12, %17 : vector<16x128xf32>
    %19 = arith.mulf %5, %18 : vector<16x128xf32>
    %c0_13 = arith.constant 0 : index
    %c0_14 = arith.constant 0 : index
    %20 = vector.load %arg6[%c0_13, %c0_14] : memref<128x32xf32, #tpu.memory_space<vmem>>, vector<128x32xf32>
    %cst_15 = arith.constant dense<0.000000e+00> : vector<16x32xf32>
    %21 = tpu.matmul %19, %20, %cst_15 {dimension_numbers = #tpu.dot_dimension_numbers<[1], [0], [0], [1], [0, 0, 1, 1], [], []>} : vector<16x128xf32>, vector<128x32xf32>, vector<16x32xf32> -> vector<16x32xf32>
    %c0_16 = arith.constant 0 : index
    %c0_17 = arith.constant 0 : index
    %22 = vector.load %arg7[%c0_16, %c0_17] : memref<1x32xf32, #tpu.memory_space<vmem>>, vector<1x32xf32>
    %23 = vector.broadcast %22 : vector<1x32xf32> to vector<16x32xf32>
    %24 = arith.addf %21, %23 : vector<16x32xf32>
    %c0_18 = arith.constant 0 : index
    %c0_19 = arith.constant 0 : index
    %25 = vector.load %arg8[%c0_18, %c0_19] : memref<16x32xf32, #tpu.memory_space<vmem>>, vector<16x32xf32>
    tpu.vector_store %arg8[%c0_18, %c0_19], %24 {strides = array<i32>} : memref<16x32xf32, #tpu.memory_space<vmem>>, vector<16x32xf32>,
    return
  }
  func.func @transform_0(%arg0: i32) -> (i32, i32) {
    %c0_i32 = arith.constant 0 : i32
    %c0_i32_0 = arith.constant 0 : i32
    return %arg0, %c0_i32 : i32, i32
  }
  func.func @transform_1(%arg0: i32) -> (i32, i32) {
    %c0_i32 = arith.constant 0 : i32
    %c0_i32_0 = arith.constant 0 : i32
    %c0_i32_1 = arith.constant 0 : i32
    return %c0_i32, %c0_i32_0 : i32, i32
  }
  func.func @transform_2(%arg0: i32) -> (i32, i32) {
    %c0_i32 = arith.constant 0 : i32
    %c0_i32_0 = arith.constant 0 : i32
    %c0_i32_1 = arith.constant 0 : i32
    return %c0_i32, %c0_i32_0 : i32, i32
  }
  func.func @transform_3(%arg0: i32) -> (i32, i32) {
    %c0_i32 = arith.constant 0 : i32
    %c0_i32_0 = arith.constant 0 : i32
    %c0_i32_1 = arith.constant 0 : i32
    return %c0_i32, %c0_i32_0 : i32, i32
  }
  func.func @transform_4(%arg0: i32) -> (i32, i32) {
    %c0_i32 = arith.constant 0 : i32
    %c0_i32_0 = arith.constant 0 : i32
    %c0_i32_1 = arith.constant 0 : i32
    return %c0_i32, %c0_i32_0 : i32, i32
  }
  func.func @transform_5(%arg0: i32) -> (i32, i32) {
    %c0_i32 = arith.constant 0 : i32
    %c0_i32_0 = arith.constant 0 : i32
    %c0_i32_1 = arith.constant 0 : i32
    return %c0_i32, %c0_i32_0 : i32, i32
  }
  func.func @transform_6(%arg0: i32) -> (i32, i32) {
    %c0_i32 = arith.constant 0 : i32
    %c0_i32_0 = arith.constant 0 : i32
    %c0_i32_1 = arith.constant 0 : i32
    return %c0_i32, %c0_i32_0 : i32, i32
  }
  func.func @transform_7(%arg0: i32) -> (i32, i32) {
    %c0_i32 = arith.constant 0 : i32
    %c0_i32_0 = arith.constant 0 : i32
    return %arg0, %c0_i32 : i32, i32
  }
}

</mosaic_0001>

<llo_original>
// kernel: tpu_custom_call.1
$region0: #{tpu_custom_call.1}
  #allocation0 [shape = 'u32[]', space=smem, size = 0x4, offset = 0x4, fixed_abs, tag = 'smem constant byte address 0x4 - core index']
  #allocation1 [shape = 'u32[144,128]{1,0:T(1,128)}', space=vmem, size = 0x12000, scoped, tag = 'internal scratch']
  %s0 = inlined_call_operand.vmem [shape: f32[16,32], index: 0, kind: input, shape index: {}]
  %s1 = inlined_call_operand.vmem [shape: f32[32,128], index: 1, kind: input, shape index: {}]
  %s2 = inlined_call_operand.vmem [shape: f32[32,128], index: 2, kind: input, shape index: {}]
  %s3 = inlined_call_operand.vmem [shape: f32[1,128], index: 3, kind: input, shape index: {}]
  %s4 = inlined_call_operand.vmem [shape: f32[1,128], index: 4, kind: input, shape index: {}]
  %s5 = inlined_call_operand.vmem [shape: f32[128,32], index: 5, kind: input, shape index: {}]
  %s6 = inlined_call_operand.vmem [shape: f32[1,32], index: 6, kind: input, shape index: {}]
  %s7 = inlined_call_operand.hbm [shape: f32[16,32], index: 7, kind: output, shape index: {}]
  %s8 = sld [smem:[#allocation0]]
  $region38: #{tpu_custom_call.1} parent=0
    _
  %s10 = ssub.s32 1, %s8
  %s11 = scalar_select 0, %s10, %s8
  $region1: #{tpu_custom_call.1} parent=0
    #allocation2 [shape = 'u8[8192]{0}', space=vmem, size = 0x2000, scoped, tag = 'output window, operand 0, single buffered']
    #allocation3 [shape = 's32[1]{0}', space=sflag, size = 0x4, scoped, tag = 'scoped memory for tpu_custom_call.1']
    %12 = vsyncpa [#allocation3], 0
    // Predicated region
    $region2: #{tpu_custom_call.1} parent=1 // pred_check
      _
    $region3: #{tpu_custom_call.1} parent=1 // pred_check_branch
      %14 = sbr.rel (0) target = $region5
    $region4: #{tpu_custom_call.1} parent=1 // pred_region
      _
    $region5: #{tpu_custom_call.1} parent=1 // pred_fallthru
      _
    // Predicated region
    $region6: #{tpu_custom_call.1} parent=1 // pred_check
      _
    $region7: #{tpu_custom_call.1} parent=1 // pred_check_branch
      %16 = sbr.rel (0) target = $region9
    $region8: #{tpu_custom_call.1} parent=1 // pred_region
      _
    $region9: #{tpu_custom_call.1} parent=1 // pred_fallthru
      _
    // Predicated region
    $region10: #{tpu_custom_call.1} parent=1 // pred_check
      _
    $region11: #{tpu_custom_call.1} parent=1 // pred_check_branch
      %18 = sbr.rel (0) target = $region13
    $region12: #{tpu_custom_call.1} parent=1 // pred_region
      _
    $region13: #{tpu_custom_call.1} parent=1 // pred_fallthru
      _
    // Predicated region
    $region14: #{tpu_custom_call.1} parent=1 // pred_check
      _
    $region15: #{tpu_custom_call.1} parent=1 // pred_check_branch
      %20 = sbr.rel (0) target = $region17
    $region16: #{tpu_custom_call.1} parent=1 // pred_region
      _
    $region17: #{tpu_custom_call.1} parent=1 // pred_fallthru
      _
    // Predicated region
    $region18: #{tpu_custom_call.1} parent=1 // pred_check
      _
    $region19: #{tpu_custom_call.1} parent=1 // pred_check_branch
      %22 = sbr.rel (0) target = $region21
    $region20: #{tpu_custom_call.1} parent=1 // pred_region
      _
    $region21: #{tpu_custom_call.1} parent=1 // pred_fallthru
      _
    // Predicated region
    $region22: #{tpu_custom_call.1} parent=1 // pred_check
      _
    $region23: #{tpu_custom_call.1} parent=1 // pred_check_branch
      %24 = sbr.rel (0) target = $region25
    $region24: #{tpu_custom_call.1} parent=1 // pred_region
      _
    $region25: #{tpu_custom_call.1} parent=1 // pred_fallthru
      _
    // Predicated region
    $region26: #{tpu_custom_call.1} parent=1 // pred_check
      _
    $region27: #{tpu_custom_call.1} parent=1 // pred_check_branch
      %26 = sbr.rel (0) target = $region29
    $region28: #{tpu_custom_call.1} parent=1 // pred_region
      _
    $region29: #{tpu_custom_call.1} parent=1 // pred_fallthru
      _
    %v27 = vld [vmem:[%s0] sm:$0xff]
    %v28 = vld [vmem:[%s0 + $0x8] sm:$0xff]
    %v29 = vld [vmem:[%s1] sm:$0xff]
    %v30 = vld [vmem:[%s1 + $0x8] sm:$0xff]
    %v31 = vld [vmem:[%s1 + $0x10] sm:$0xff]
    %v32 = vld [vmem:[%s1 + $0x18] sm:$0xff]
    %v33 = vld [vmem:[%s3] sm:$0x1]
    %v35 = vlaneseq
    %v36 = vshrl.u32 %v35, 7
    %v37 = vsub.s32 0, %v36
    %v38 = vrot.slane %v33, %v37
    %vm40 = vcmask 261120
    %v42 = vsel %vm40, %v27, 0
    %v45 = vsel %vm40, %v28, 0
    %47 = vmatprep.subr.mxu0 0.0
    %48 = vmatpush1.msra.mxu0 0.0
    %49 = vmatprep.subr.mxu0 0.0
    %50 = vmatpush1.msra.mxu0 0.0
    %51 = vmatprep.subr.mxu0 0.0
    %52 = vmatpush1.msra.mxu0 0.0
    %53 = vmatprep.subr.mxu0 0.0
    %54 = vmatpush1.msra.mxu0 0.0
    %55 = vmatprep.subr.mxu0 0.0
    %56 = vmatpush1.msra.mxu0 0.0
    %57 = vmatprep.subr.mxu0 0.0
    %58 = vmatpush1.msra.mxu0 0.0
    %59 = vmatprep.subr.mxu0 0.0
    %60 = vmatpush1.msra.mxu0 0.0
    %61 = vmatprep.subr.mxu0 0.0
    %62 = vmatpush1.msra.mxu0 0.0
    %63 = vmatprep.subr.mxu0 0.0
    %64 = vmatpush1.msra.mxu0 0.0
    %65 = vmatprep.subr.mxu0 0.0
    %66 = vmatpush1.msra.mxu0 0.0
    %67 = vmatprep.subr.mxu0 0.0
    %68 = vmatpush1.msra.mxu0 0.0
    %69 = vmatprep.subr.mxu0 0.0
    %70 = vmatpush1.msra.mxu0 0.0
    %71 = vmatprep.subr.mxu0 0.0
    %72 = vmatpush1.msra.mxu0 %v32
    %73 = vmatprep.subr.mxu0 0.0
    %74 = vmatpush1.msra.mxu0 %v31
    %75 = vmatprep.subr.mxu0 0.0
    %76 = vmatpush1.msra.mxu0 %v30
    %77 = vmatprep.subr.mxu0 0.0
    %78 = vmatpush1.msra.mxu0 %v29
    %79 = vmatprep.subr.mxu0 0.0
    %80 = vmatpush2.msra.mxu0 0.0
    %81 = vmatprep.subr.mxu0 0.0
    %82 = vmatpush2.msra.mxu0 0.0
    %83 = vmatprep.subr.mxu0 0.0
    %84 = vmatpush2.msra.mxu0 0.0
    %85 = vmatprep.subr.mxu0 0.0
    %86 = vmatpush2.msra.mxu0 0.0
    %87 = vmatprep.subr.mxu0 0.0
    %88 = vmatpush2.msra.mxu0 0.0
    %89 = vmatprep.subr.mxu0 0.0
    %90 = vmatpush2.msra.mxu0 0.0
    %91 = vmatprep.subr.mxu0 0.0
    %92 = vmatpush2.msra.mxu0 0.0
    %93 = vmatprep.subr.mxu0 0.0
    %94 = vmatpush2.msra.mxu0 0.0
    %95 = vmatprep.subr.mxu0 0.0
    %96 = vmatpush2.msra.mxu0 0.0
    %97 = vmatprep.subr.mxu0 0.0
    %98 = vmatpush2.msra.mxu0 0.0
    %99 = vmatprep.subr.mxu0 0.0
    %100 = vmatpush2.msra.mxu0 0.0
    %101 = vmatprep.subr.mxu0 0.0
    %102 = vmatpush2.msra.mxu0 0.0
    %103 = vmatprep.subr.mxu0 0.0
    %104 = vmatpush2.msra.mxu0 0.0
    %105 = vmatprep.subr.mxu0 0.0
    %106 = vmatpush2.msra.mxu0 0.0
    %107 = vmatprep.subr.mxu0 0.0
    %108 = vmatpush2.msra.mxu0 0.0
    %109 = vmatprep.subr.mxu0 0.0
    %110 = vmatpush2.msra.mxu0 0.0
    %111 = vmatprep.mubr.f32.mxu0 0.0
    %112 = vmatmul.mubr.f32.gmra.mxu0 %v42
    %v113 = vpop.f32.mrf.mxu0
    %v114 = vadd.f32 %v38, %v113
    %v115 = vpop.f32.mrf.mxu0
    %116 = vmatprep.mubr.f32.mxu0 0.0
    %117 = vmatmul.mubr.f32.gmra.mxu0 %v45
    %v118 = vpop.f32.mrf.mxu0
    %v119 = vadd.f32 %v38, %v118
    %v120 = vpop.f32.mrf.mxu0
    %121 = vdwg.mxu0
    %v122 = vld [vmem:[%s2] sm:$0xff]
    %v123 = vld [vmem:[%s2 + $0x8] sm:$0xff]
    %v124 = vld [vmem:[%s2 + $0x10] sm:$0xff]
    %v125 = vld [vmem:[%s2 + $0x18] sm:$0xff]
    %v126 = vld [vmem:[%s4] sm:$0x1]
    %v128 = vlaneseq
    %v129 = vshrl.u32 %v128, 7
    %v130 = vsub.s32 0, %v129
    %v131 = vrot.slane %v126, %v130
    %133 = vmatprep.subr.mxu0 0.0
    %134 = vmatpush1.msra.mxu0 0.0
    %135 = vmatprep.subr.mxu0 0.0
    %136 = vmatpush1.msra.mxu0 0.0
    %137 = vmatprep.subr.mxu0 0.0
    %138 = vmatpush1.msra.mxu0 0.0
    %139 = vmatprep.subr.mxu0 0.0
    %140 = vmatpush1.msra.mxu0 0.0
    %141 = vmatprep.subr.mxu0 0.0
    %142 = vmatpush1.msra.mxu0 0.0
    %143 = vmatprep.subr.mxu0 0.0
    %144 = vmatpush1.msra.mxu0 0.0
    %145 = vmatprep.subr.mxu0 0.0
    %146 = vmatpush1.msra.mxu0 0.0
    %147 = vmatprep.subr.mxu0 0.0
    %148 = vmatpush1.msra.mxu0 0.0
    %149 = vmatprep.subr.mxu0 0.0
    %150 = vmatpush1.msra.mxu0 0.0
    %151 = vmatprep.subr.mxu0 0.0
    %152 = vmatpush1.msra.mxu0 0.0
    %153 = vmatprep.subr.mxu0 0.0
    %154 = vmatpush1.msra.mxu0 0.0
    %155 = vmatprep.subr.mxu0 0.0
    %156 = vmatpush1.msra.mxu0 0.0
    %157 = vmatprep.subr.mxu0 0.0
    %158 = vmatpush1.msra.mxu0 %v125
    %159 = vmatprep.subr.mxu0 0.0
    %160 = vmatpush1.msra.mxu0 %v124
    %161 = vmatprep.subr.mxu0 0.0
    %162 = vmatpush1.msra.mxu0 %v123
    %163 = vmatprep.subr.mxu0 0.0
    %164 = vmatpush1.msra.mxu0 %v122
    %165 = vmatprep.subr.mxu0 0.0
    %166 = vmatpush2.msra.mxu0 0.0
    %167 = vmatprep.subr.mxu0 0.0
    %168 = vmatpush2.msra.mxu0 0.0
    %169 = vmatprep.subr.mxu0 0.0
    %170 = vmatpush2.msra.mxu0 0.0
    %171 = vmatprep.subr.mxu0 0.0
    %172 = vmatpush2.msra.mxu0 0.0
    %173 = vmatprep.subr.mxu0 0.0
    %174 = vmatpush2.msra.mxu0 0.0
    %175 = vmatprep.subr.mxu0 0.0
    %176 = vmatpush2.msra.mxu0 0.0
    %177 = vmatprep.subr.mxu0 0.0
    %178 = vmatpush2.msra.mxu0 0.0
    %179 = vmatprep.subr.mxu0 0.0
    %180 = vmatpush2.msra.mxu0 0.0
    %181 = vmatprep.subr.mxu0 0.0
    %182 = vmatpush2.msra.mxu0 0.0
    %183 = vmatprep.subr.mxu0 0.0
    %184 = vmatpush2.msra.mxu0 0.0
    %185 = vmatprep.subr.mxu0 0.0
    %186 = vmatpush2.msra.mxu0 0.0
    %187 = vmatprep.subr.mxu0 0.0
    %188 = vmatpush2.msra.mxu0 0.0
    %189 = vmatprep.subr.mxu0 0.0
    %190 = vmatpush2.msra.mxu0 0.0
    %191 = vmatprep.subr.mxu0 0.0
    %192 = vmatpush2.msra.mxu0 0.0
    %193 = vmatprep.subr.mxu0 0.0
    %194 = vmatpush2.msra.mxu0 0.0
    %195 = vmatprep.subr.mxu0 0.0
    %196 = vmatpush2.msra.mxu0 0.0
    %197 = vmatprep.mubr.f32.mxu0 0.0
    %198 = vmatmul.mubr.f32.gmra.mxu0 %v42
    %v199 = vpop.f32.mrf.mxu0
    %v200 = vadd.f32 %v131, %v199
    %v201 = vpop.f32.mrf.mxu0
    %202 = vmatprep.mubr.f32.mxu0 0.0
    %203 = vmatmul.mubr.f32.gmra.mxu0 %v45
    %v204 = vpop.f32.mrf.mxu0
    %v205 = vadd.f32 %v131, %v204
    %v206 = vpop.f32.mrf.mxu0
    %207 = vdwg.mxu0
    %v208 = vmul.f32 %v200, 0.5
    %v209 = vmul.f32 %v205, 0.5
    %v210 = vmul.f32 %v200, 0.70710677
    %v211 = vmul.f32 %v205, 0.70710677
    %v212 = verf.f32.pop %v210
    %v213 = verf.f32.pop %v211
    %v214 = vadd.f32 %v212, 1.0
    %v215 = vadd.f32 %v213, 1.0
    %v216 = vmul.f32 %v208, %v214
    %v217 = vmul.f32 %v209, %v215
    %v218 = vmul.f32 %v114, %v216
    %v219 = vmul.f32 %v119, %v217
    %v220 = vld [vmem:[%s5] sm:$0xff]
    %v221 = vld [vmem:[%s5 + $0x8] sm:$0xff]
    %v222 = vld [vmem:[%s5 + $0x10] sm:$0xff]
    %v223 = vld [vmem:[%s5 + $0x18] sm:$0xff]
    %v224 = vld [vmem:[%s5 + $0x20] sm:$0xff]
    %v225 = vld [vmem:[%s5 + $0x28] sm:$0xff]
    %v226 = vld [vmem:[%s5 + $0x30] sm:$0xff]
    %v227 = vld [vmem:[%s5 + $0x38] sm:$0xff]
    %v228 = vld [vmem:[%s5 + $0x40] sm:$0xff]
    %v229 = vld [vmem:[%s5 + $0x48] sm:$0xff]
    %v230 = vld [vmem:[%s5 + $0x50] sm:$0xff]
    %v231 = vld [vmem:[%s5 + $0x58] sm:$0xff]
    %v232 = vld [vmem:[%s5 + $0x60] sm:$0xff]
    %v233 = vld [vmem:[%s5 + $0x68] sm:$0xff]
    %v234 = vld [vmem:[%s5 + $0x70] sm:$0xff]
    %v235 = vld [vmem:[%s5 + $0x78] sm:$0xff]
    %v236 = vld [vmem:[%s6] sm:$0x1]
    %v238 = vlaneseq
    %v239 = vshrl.u32 %v238, 7
    %v240 = vsub.s32 0, %v239
    %v241 = vrot.slane %v236, %v240
    %243 = vmatprep.subr.mxu0 0.0
    %244 = vmatpush1.msra.mxu0 %v235
    %245 = vmatprep.subr.mxu0 0.0
    %246 = vmatpush1.msra.mxu0 %v234
    %247 = vmatprep.subr.mxu0 0.0
    %248 = vmatpush1.msra.mxu0 %v233
    %249 = vmatprep.subr.mxu0 0.0
    %250 = vmatpush1.msra.mxu0 %v232
    %251 = vmatprep.subr.mxu0 0.0
    %252 = vmatpush1.msra.mxu0 %v231
    %253 = vmatprep.subr.mxu0 0.0
    %254 = vmatpush1.msra.mxu0 %v230
    %255 = vmatprep.subr.mxu0 0.0
    %256 = vmatpush1.msra.mxu0 %v229
    %257 = vmatprep.subr.mxu0 0.0
    %258 = vmatpush1.msra.mxu0 %v228
    %259 = vmatprep.subr.mxu0 0.0
    %260 = vmatpush1.msra.mxu0 %v227
    %261 = vmatprep.subr.mxu0 0.0
    %262 = vmatpush1.msra.mxu0 %v226
    %263 = vmatprep.subr.mxu0 0.0
    %264 = vmatpush1.msra.mxu0 %v225
    %265 = vmatprep.subr.mxu0 0.0
    %266 = vmatpush1.msra.mxu0 %v224
    %267 = vmatprep.subr.mxu0 0.0
    %268 = vmatpush1.msra.mxu0 %v223
    %269 = vmatprep.subr.mxu0 0.0
    %270 = vmatpush1.msra.mxu0 %v222
    %271 = vmatprep.subr.mxu0 0.0
    %272 = vmatpush1.msra.mxu0 %v221
    %273 = vmatprep.subr.mxu0 0.0
    %274 = vmatpush1.msra.mxu0 %v220
    %275 = vmatprep.subr.mxu0 0.0
    %276 = vmatpush2.msra.mxu0 0.0
    %277 = vmatprep.subr.mxu0 0.0
    %278 = vmatpush2.msra.mxu0 0.0
    %279 = vmatprep.subr.mxu0 0.0
    %280 = vmatpush2.msra.mxu0 0.0
    %281 = vmatprep.subr.mxu0 0.0
    %282 = vmatpush2.msra.mxu0 0.0
    %283 = vmatprep.subr.mxu0 0.0
    %284 = vmatpush2.msra.mxu0 0.0
    %285 = vmatprep.subr.mxu0 0.0
    %286 = vmatpush2.msra.mxu0 0.0
    %287 = vmatprep.subr.mxu0 0.0
    %288 = vmatpush2.msra.mxu0 0.0
    %289 = vmatprep.subr.mxu0 0.0
    %290 = vmatpush2.msra.mxu0 0.0
    %291 = vmatprep.subr.mxu0 0.0
    %292 = vmatpush2.msra.mxu0 0.0
    %293 = vmatprep.subr.mxu0 0.0
    %294 = vmatpush2.msra.mxu0 0.0
    %295 = vmatprep.subr.mxu0 0.0
    %296 = vmatpush2.msra.mxu0 0.0
    %297 = vmatprep.subr.mxu0 0.0
    %298 = vmatpush2.msra.mxu0 0.0
    %299 = vmatprep.subr.mxu0 0.0
    %300 = vmatpush2.msra.mxu0 0.0
    %301 = vmatprep.subr.mxu0 0.0
    %302 = vmatpush2.msra.mxu0 0.0
    %303 = vmatprep.subr.mxu0 0.0
    %304 = vmatpush2.msra.mxu0 0.0
    %305 = vmatprep.subr.mxu0 0.0
    %306 = vmatpush2.msra.mxu0 0.0
    %307 = vmatprep.mubr.f32.mxu0 0.0
    %308 = vmatmul.mubr.f32.gmra.mxu0 %v218
    %v309 = vpop.f32.mrf.mxu0
    %v310 = vadd.f32 %v241, %v309
    %v311 = vpop.f32.mrf.mxu0
    %312 = vmatprep.mubr.f32.mxu0 0.0
    %313 = vmatmul.mubr.f32.gmra.mxu0 %v219
    %v314 = vpop.f32.mrf.mxu0
    %v315 = vadd.f32 %v241, %v314
    %v316 = vpop.f32.mrf.mxu0
    %317 = vdwg.mxu0
    %318 = vst.msk [vmem:[#allocation2] sm:$0xff] %vm40, %v310
    %319 = vst.msk [vmem:[#allocation2 + $0x8] sm:$0xff] %vm40, %v315
    // Predicated region
    $region30: #{tpu_custom_call.1} parent=1 // pred_check
      _
    $region31: #{tpu_custom_call.1} parent=1 // pred_check_branch
      %321 = sbr.rel (0) target = $region33
    $region32: #{tpu_custom_call.1} parent=1 // pred_region
      %s323 = ssub.s32 256, 256
      %324 = vsyncadd [#allocation3], %s323
      %s325 = sshll.u32 [#allocation2], 4
      %s326 = int_to_ptr.vmem [resolvable:$true] %s325
      %331 = dma.vmem_to_hbm [thread:$0]  %s326, 256, %s7, [#allocation3], 128, 128, 8
    $region33: #{tpu_custom_call.1} parent=1 // pred_fallthru
      _
    // Predicated region
    $region34: #{tpu_custom_call.1} parent=1 // pred_check
      _
    $region35: #{tpu_custom_call.1} parent=1 // pred_check_branch
      %333 = sbr.rel (0) target = $region37
    $region36: #{tpu_custom_call.1} parent=1 // pred_region
      %334 = dma.done [#allocation3], 256
    $region37: #{tpu_custom_call.1} parent=1 // pred_fallthru
      _
    %335 = vsyncpa [#allocation3], 1

</llo_original>
